<compile_context>
chip_gen: v6e
topology: v6e:2x2x1
jax: 0.10.0
libtpu: 0.0.40
codegen_flags: <defaults>
</compile_context>

<pallas_src>
import functools

import jax
import jax.numpy as jnp
from jax.experimental import pallas as pl
from jax.experimental.pallas import tpu as pltpu

_LANES = 128   # vreg lane count
_SUB = 8       # vreg sublane count (f32)


def _round_up(x, m):
    return (x + m - 1) // m * m


def _ordinal_loss_kernel(cut_ref, pred_ref, label_ref, lik_ref, lsum_ref, *,
                         num_class, batch):
    """One batch tile, sublane+lane dense.

      cut_ref  : (num_class-1,)          f32  SMEM  cutpoints (scalar reads)
      pred_ref : (rows, 128)             f32  VMEM  predictions
      label_ref: (rows, 128)             i32  VMEM  labels
      lik_ref  : (num_class, rows, 128)  f32  VMEM  clamped likelihoods (class-major)
      lsum_ref : (8, 128)                f32  VMEM  per-tile partial sums of log-lik
    """
    pred = pred_ref[...]
    label = label_ref[...]
    rows, lanes = pred.shape
    tile = rows * lanes
    eps = 1e-15

    # Unrolled class loop (num_class is small & static).  Only the previous and
    # current sigmoid planes are live -> no (C, TB) concat / one-hot temporaries
    # and no sublane-padding waste on the EUP/VPU.
    s_prev = jnp.zeros_like(pred)              # sigmoid(-inf - pred) == 0
    acc = jnp.zeros_like(pred)                 # likelihood of the labelled class
    for c in range(num_class):
        if c < num_class - 1:
            s_cur = jax.nn.sigmoid(cut_ref[c] - pred)   # scalar - vector broadcast
        else:
            s_cur = jnp.ones_like(pred)        # sigmoid(+inf - pred) == 1
        # clamp(link, eps, 1 - eps): the upper bound rounds to exactly 1.0 in
        # f32 and link <= 1 by construction, so only the lower clamp is real.
        lik_c = jnp.maximum(s_cur - s_prev, eps)
        lik_ref[c, :, :] = lik_c
        acc = jnp.where(label == c, lik_c, acc)          # gather-before-log
        s_prev = s_cur

    # Per-tile partial sum of log-likelihoods; padded / out-of-range lanes
    # (global sample index >= batch) are masked here, in-kernel.
    sub = jax.lax.broadcasted_iota(jnp.int32, (rows, lanes), 0)
    lane = jax.lax.broadcasted_iota(jnp.int32, (rows, lanes), 1)
    gidx = pl.program_id(0) * tile + sub * lanes + lane
    masked = jnp.where(gidx < batch, jnp.log(acc), 0.0)
    # (rows,128) -> (rows//8, 8, 128) is a layout no-op (whole vreg tiles);
    # the sum over the leading axis is plain vreg adds, no cross-lane reduce.
    lsum_ref[...] = masked.reshape(rows // _SUB, _SUB, lanes).sum(axis=0)


def ordinal_regression_loss(pred, label, num_class, scale=20.0, cutpoints=None,
                            block_b=32768, vmem_limit_bytes=32 * 1024 * 1024,
                            class_major_output=False):
    """Forward pass of OrdinalRegressionLoss.

    Returns (loss, likelihoods); likelihoods is (B, num_class) like the PyTorch
    module (or (num_class, B) if class_major_output=True, which skips the
    wrapper-side transpose for consumers that accept class-major layout).
    """
    if cutpoints is None:
        # Deterministic init, exactly as the PyTorch module's __init__.
        # TODO(synk): in the module the cutpoints are an (optionally trainable)
        # nn.Parameter; pass learned cutpoints via this argument — forward only,
        # no custom VJP is provided here.  (num_class == 2 divides by zero in
        # this init, faithfully to the original module.)
        num_cutpoints = num_class - 1
        cutpoints = (jnp.arange(num_cutpoints, dtype=jnp.float32)
                     * scale / (num_class - 2) - scale / 2.0)
    cutpoints = jnp.asarray(cutpoints, jnp.float32).reshape(num_class - 1)

    pred_flat = jnp.asarray(pred, jnp.float32).reshape(-1)
    batch = pred_flat.shape[0]

    # Pad to a whole number of (8, 128) vreg tiles (no pad op at all when the
    # batch is already a multiple of 1024).
    b_pad = _round_up(batch, _LANES * _SUB)
    rows_total = b_pad // _LANES                     # multiple of 8

    # Tile size: as large as the VMEM budget allows (lik double-buffered +
    # pred/label double-buffered + ~6 live temporaries, all f32 per lane) ...
    budget = int(vmem_limit_bytes * 0.75)
    bytes_per_lane = 4 * (2 * num_class + 4 + 6)
    rows_cap = max(_SUB, (budget // bytes_per_lane) // _LANES // _SUB * _SUB)
    rows_tile = min(block_b // _LANES, rows_total, rows_cap)
    # ... but keep >= 2 grid steps when possible so the "parallel" grid axis
    # can shard across v7x's two TensorCores (no-op on v5e/v6e).
    if rows_total >= 2 * _SUB:
        rows_tile = min(rows_tile, _round_up(pl.cdiv(rows_total, 2), _SUB))
    rows_tile = min(_round_up(max(rows_tile, _SUB), _SUB), rows_total)
    num_tiles = pl.cdiv(rows_total, rows_tile)       # ragged last tile allowed

    if b_pad != batch:
        pred_flat = jnp.pad(pred_flat, (0, b_pad - batch))
    pred2d = pred_flat.reshape(rows_total, _LANES)

    if label is None:
        label_flat = jnp.zeros((b_pad,), jnp.int32)
    else:
        label_flat = jnp.asarray(label, jnp.int32).reshape(-1)
        if b_pad != batch:
            label_flat = jnp.pad(label_flat, (0, b_pad - batch))
    label2d = label_flat.reshape(rows_total, _LANES)

    kernel = functools.partial(_ordinal_loss_kernel,
                               num_class=num_class, batch=batch)

    cost = pl.CostEstimate(
        flops=6 * num_class * b_pad,
        transcendentals=num_class * b_pad,        # (C-1) sigmoids + 1 log / sample
        bytes_accessed=(4 * num_class + 8) * b_pad + 4 * (num_class - 1),
    )

    lik3d, lsum = pl.pallas_call(
        kernel,
        grid=(num_tiles,),
        in_specs=[
            pl.BlockSpec(memory_space=pltpu.MemorySpace.SMEM),      # cutpoints
            pl.BlockSpec((rows_tile, _LANES), lambda i: (i, 0)),    # pred tile
            pl.BlockSpec((rows_tile, _LANES), lambda i: (i, 0)),    # label tile
        ],
        out_specs=(
            pl.BlockSpec((num_class, rows_tile, _LANES), lambda i: (0, i, 0)),
            pl.BlockSpec((_SUB, _LANES), lambda i: (i, 0)),
        ),
        out_shape=(
            jax.ShapeDtypeStruct((num_class, rows_total, _LANES), jnp.float32),
            jax.ShapeDtypeStruct((num_tiles * _SUB, _LANES), jnp.float32),
        ),
        compiler_params=pltpu.CompilerParams(
            dimension_semantics=("parallel",),   # every tile writes its own blocks
            vmem_limit_bytes=vmem_limit_bytes,
        ),
        cost_estimate=cost,
    )(cutpoints, pred2d, label2d)

    # Free, contiguous reshape to class-major (C, B); the (B, C) transpose the
    # module's contract requires is the only remaining layout cost.
    lik_cm = lik3d.reshape(num_class, b_pad)[:, :batch]
    likelihoods = lik_cm if class_major_output else lik_cm.T

    if label is None:
        return jnp.float32(0.0), likelihoods
    loss = -jnp.sum(lsum) * (1.0 / batch)        # mean with trace-time 1/B
    return loss, likelihoods


def _reference(pred, label, num_class, scale=20.0):
    # Pure-JAX reference mirroring the PyTorch forward, for a sanity check.
    num_cutpoints = num_class - 1
    cutpoints = (jnp.arange(num_cutpoints, dtype=jnp.float32)
                 * scale / (num_class - 2) - scale / 2.0)
    sig = jax.nn.sigmoid(cutpoints[None, :] - pred.astype(jnp.float32).reshape(-1, 1))
    link = jnp.concatenate(
        [sig[:, :1], sig[:, 1:] - sig[:, :-1], 1.0 - sig[:, -1:]], axis=1)
    eps = 1e-15
    lik = jnp.clip(link, eps, 1.0 - eps)
    logl = jnp.log(lik)
    gathered = jnp.take_along_axis(logl, label.astype(jnp.int32).reshape(-1, 1), axis=1)
    return -jnp.mean(gathered), lik


if __name__ == "__main__":
    NUM_CLASS = 10
    SCALE = 20.0
    key = jax.random.PRNGKey(0)
    k1, k2, k3, k4 = jax.random.split(key, 4)

    # Small shape consistent with the module: pred (B, 1), label (B, 1).
    B = 8
    pred = jax.random.normal(k1, (B, 1), dtype=jnp.float32) * 3.0
    label = jax.random.randint(k2, (B, 1), 0, NUM_CLASS, dtype=jnp.int32)

    loss, lik = ordinal_regression_loss(pred, label, NUM_CLASS, SCALE)
    jax.block_until_ready((loss, lik))
    ref_loss, ref_lik = _reference(pred, label, NUM_CLASS, SCALE)
    assert lik.shape == (B, NUM_CLASS)
    assert jnp.allclose(lik, ref_lik, atol=1e-6, rtol=1e-6), "likelihood mismatch"
    assert jnp.allclose(loss, ref_loss, atol=1e-5, rtol=1e-5), "loss mismatch"

    # Second check: non-multiple-of-1024 batch -> exercises the lane padding,
    # the multi-tile grid (2 tiles on the 'parallel' axis), the partial last
    # block, and the in-kernel masking of padded samples.
    B2 = 2560
    pred2 = jax.random.normal(k3, (B2, 1), dtype=jnp.float32) * 3.0
    label2 = jax.random.randint(k4, (B2, 1), 0, NUM_CLASS, dtype=jnp.int32)
    loss2, lik2 = ordinal_regression_loss(pred2, label2, NUM_CLASS, SCALE)
    jax.block_until_ready((loss2, lik2))
    ref_loss2, ref_lik2 = _reference(pred2, label2, NUM_CLASS, SCALE)
    assert lik2.shape == (B2, NUM_CLASS)
    assert jnp.allclose(lik2, ref_lik2, atol=1e-6, rtol=1e-6), "likelihood mismatch (tiled)"
    assert jnp.allclose(loss2, ref_loss2, atol=1e-5, rtol=1e-5), "loss mismatch (tiled)"

    print("KERNEL_OK")
</pallas_src>

<mosaic_0001>
module attributes {stable_mosaic.version = 11 : i64} {
  func.func @_ordinal_loss_kernel(%arg0: i32, %arg1: memref<9xf32, #tpu.memory_space<smem>>, %arg2: memref<8x128xf32, #tpu.memory_space<vmem>>, %arg3: memref<8x128xi32, #tpu.memory_space<vmem>>, %arg4: memref<10x8x128xf32, #tpu.memory_space<vmem>>, %arg5: memref<8x128xf32, #tpu.memory_space<vmem>>) attributes {dimension_semantics = [#tpu.dimension_semantics<parallel>], iteration_bounds = array<i64: 1>, scalar_prefetch = 0 : i64, scratch_operands = 0 : i64, tpu.core_type = #tpu.core_type<tc>, window_params = [{transform_indices = @transform_0, window_bounds = array<i64: 9>}, {transform_indices = @transform_1, window_bounds = array<i64: 8, 128>}, {transform_indices = @transform_2, window_bounds = array<i64: 8, 128>}, {transform_indices = @transform_3, window_bounds = array<i64: 10, 8, 128>}, {transform_indices = @transform_4, window_bounds = array<i64: 8, 128>}]} {
    %c0 = arith.constant 0 : index
    %c0_0 = arith.constant 0 : index
    %0 = vector.load %arg2[%c0, %c0_0] : memref<8x128xf32, #tpu.memory_space<vmem>>, vector<8x128xf32>
    %c0_1 = arith.constant 0 : index
    %c0_2 = arith.constant 0 : index
    %1 = vector.load %arg3[%c0_1, %c0_2] : memref<8x128xi32, #tpu.memory_space<vmem>>, vector<8x128xi32>
    %cst = arith.constant 0.000000e+00 : f32
    %2 = vector.broadcast %cst : f32 to vector<8x128xf32>
    %cst_3 = arith.constant 0.000000e+00 : f32
    %3 = vector.broadcast %cst_3 : f32 to vector<8x128xf32>
    %c0_4 = arith.constant 0 : index
    %4 = memref.load %arg1[%c0_4] : memref<9xf32, #tpu.memory_space<smem>>
    %5 = vector.broadcast %4 : f32 to vector<8x128xf32>
    %6 = arith.subf %5, %0 : vector<8x128xf32>
    %7 = arith.negf %6 : vector<8x128xf32>
    %8 = math.exp %7 : vector<8x128xf32>
    %cst_5 = arith.constant 1.000000e+00 : f32
    %9 = vector.broadcast %cst_5 : f32 to vector<8x128xf32>
    %10 = arith.addf %9, %8 : vector<8x128xf32>
    %11 = arith.divf %9, %10 : vector<8x128xf32>
    %12 = arith.subf %11, %2 : vector<8x128xf32>
    %cst_6 = arith.constant 1.000000e-15 : f32
    %13 = vector.broadcast %cst_6 : f32 to vector<8x128xf32>
    %14 = arith.maximumf %12, %13 : vector<8x128xf32>
    %c0_7 = arith.constant 0 : index
    %c0_8 = arith.constant 0 : index
    %c0_9 = arith.constant 0 : index
    %15 = vector.load %arg4[%c0_7, %c0_8, %c0_9] : memref<10x8x128xf32, #tpu.memory_space<vmem>>, vector<1x8x128xf32>
    %16 = vector.shape_cast %15 : vector<1x8x128xf32> to vector<8x128xf32>
    %17 = vector.shape_cast %14 : vector<8x128xf32> to vector<1x8x128xf32>
    tpu.vector_store %arg4[%c0_7, %c0_8, %c0_9], %17 {strides = array<i32>} : memref<10x8x128xf32, #tpu.memory_space<vmem>>, vector<1x8x128xf32>,
    %c0_i32 = arith.constant 0 : i32
    %18 = vector.broadcast %c0_i32 : i32 to vector<8x128xi32>
    %19 = arith.cmpi eq, %1, %18 : vector<8x128xi32>
    %20 = arith.select %19, %14, %3 : vector<8x128xi1>, vector<8x128xf32>
    %c1 = arith.constant 1 : index
    %21 = memref.load %arg1[%c1] : memref<9xf32, #tpu.memory_space<smem>>
    %22 = vector.broadcast %21 : f32 to vector<8x128xf32>
    %23 = arith.subf %22, %0 : vector<8x128xf32>
    %24 = arith.negf %23 : vector<8x128xf32>
    %25 = math.exp %24 : vector<8x128xf32>
    %cst_10 = arith.constant 1.000000e+00 : f32
    %26 = vector.broadcast %cst_10 : f32 to vector<8x128xf32>
    %27 = arith.addf %26, %25 : vector<8x128xf32>
    %28 = arith.divf %26, %27 : vector<8x128xf32>
    %29 = arith.subf %28, %11 : vector<8x128xf32>
    %cst_11 = arith.constant 1.000000e-15 : f32
    %30 = vector.broadcast %cst_11 : f32 to vector<8x128xf32>
    %31 = arith.maximumf %29, %30 : vector<8x128xf32>
    %c1_12 = arith.constant 1 : index
    %c0_13 = arith.constant 0 : index
    %c0_14 = arith.constant 0 : index
    %32 = vector.load %arg4[%c1_12, %c0_13, %c0_14] : memref<10x8x128xf32, #tpu.memory_space<vmem>>, vector<1x8x128xf32>
    %33 = vector.shape_cast %32 : vector<1x8x128xf32> to vector<8x128xf32>
    %34 = vector.shape_cast %31 : vector<8x128xf32> to vector<1x8x128xf32>
    tpu.vector_store %arg4[%c1_12, %c0_13, %c0_14], %34 {strides = array<i32>} : memref<10x8x128xf32, #tpu.memory_space<vmem>>, vector<1x8x128xf32>,
    %c1_i32 = arith.constant 1 : i32
    %35 = vector.broadcast %c1_i32 : i32 to vector<8x128xi32>
    %36 = arith.cmpi eq, %1, %35 : vector<8x128xi32>
    %37 = arith.select %36, %31, %20 : vector<8x128xi1>, vector<8x128xf32>
    %c2 = arith.constant 2 : index
    %38 = memref.load %arg1[%c2] : memref<9xf32, #tpu.memory_space<smem>>
    %39 = vector.broadcast %38 : f32 to vector<8x128xf32>
    %40 = arith.subf %39, %0 : vector<8x128xf32>
    %41 = arith.negf %40 : vector<8x128xf32>
    %42 = math.exp %41 : vector<8x128xf32>
    %cst_15 = arith.constant 1.000000e+00 : f32
    %43 = vector.broadcast %cst_15 : f32 to vector<8x128xf32>
    %44 = arith.addf %43, %42 : vector<8x128xf32>
    %45 = arith.divf %43, %44 : vector<8x128xf32>
    %46 = arith.subf %45, %28 : vector<8x128xf32>
    %cst_16 = arith.constant 1.000000e-15 : f32
    %47 = vector.broadcast %cst_16 : f32 to vector<8x128xf32>
    %48 = arith.maximumf %46, %47 : vector<8x128xf32>
    %c2_17 = arith.constant 2 : index
    %c0_18 = arith.constant 0 : index
    %c0_19 = arith.constant 0 : index
    %49 = vector.load %arg4[%c2_17, %c0_18, %c0_19] : memref<10x8x128xf32, #tpu.memory_space<vmem>>, vector<1x8x128xf32>
    %50 = vector.shape_cast %49 : vector<1x8x128xf32> to vector<8x128xf32>
    %51 = vector.shape_cast %48 : vector<8x128xf32> to vector<1x8x128xf32>
    tpu.vector_store %arg4[%c2_17, %c0_18, %c0_19], %51 {strides = array<i32>} : memref<10x8x128xf32, #tpu.memory_space<vmem>>, vector<1x8x128xf32>,
    %c2_i32 = arith.constant 2 : i32
    %52 = vector.broadcast %c2_i32 : i32 to vector<8x128xi32>
    %53 = arith.cmpi eq, %1, %52 : vector<8x128xi32>
    %54 = arith.select %53, %48, %37 : vector<8x128xi1>, vector<8x128xf32>
    %c3 = arith.constant 3 : index
    %55 = memref.load %arg1[%c3] : memref<9xf32, #tpu.memory_space<smem>>
    %56 = vector.broadcast %55 : f32 to vector<8x128xf32>
    %57 = arith.subf %56, %0 : vector<8x128xf32>
    %58 = arith.negf %57 : vector<8x128xf32>
    %59 = math.exp %58 : vector<8x128xf32>
    %cst_20 = arith.constant 1.000000e+00 : f32
    %60 = vector.broadcast %cst_20 : f32 to vector<8x128xf32>
    %61 = arith.addf %60, %59 : vector<8x128xf32>
    %62 = arith.divf %60, %61 : vector<8x128xf32>
    %63 = arith.subf %62, %45 : vector<8x128xf32>
    %cst_21 = arith.constant 1.000000e-15 : f32
    %64 = vector.broadcast %cst_21 : f32 to vector<8x128xf32>
    %65 = arith.maximumf %63, %64 : vector<8x128xf32>
    %c3_22 = arith.constant 3 : index
    %c0_23 = arith.constant 0 : index
    %c0_24 = arith.constant 0 : index
    %66 = vector.load %arg4[%c3_22, %c0_23, %c0_24] : memref<10x8x128xf32, #tpu.memory_space<vmem>>, vector<1x8x128xf32>
    %67 = vector.shape_cast %66 : vector<1x8x128xf32> to vector<8x128xf32>
    %68 = vector.shape_cast %65 : vector<8x128xf32> to vector<1x8x128xf32>
    tpu.vector_store %arg4[%c3_22, %c0_23, %c0_24], %68 {strides = array<i32>} : memref<10x8x128xf32, #tpu.memory_space<vmem>>, vector<1x8x128xf32>,
    %c3_i32 = arith.constant 3 : i32
    %69 = vector.broadcast %c3_i32 : i32 to vector<8x128xi32>
    %70 = arith.cmpi eq, %1, %69 : vector<8x128xi32>
    %71 = arith.select %70, %65, %54 : vector<8x128xi1>, vector<8x128xf32>
    %c4 = arith.constant 4 : index
    %72 = memref.load %arg1[%c4] : memref<9xf32, #tpu.memory_space<smem>>
    %73 = vector.broadcast %72 : f32 to vector<8x128xf32>
    %74 = arith.subf %73, %0 : vector<8x128xf32>
    %75 = arith.negf %74 : vector<8x128xf32>
    %76 = math.exp %75 : vector<8x128xf32>
    %cst_25 = arith.constant 1.000000e+00 : f32
    %77 = vector.broadcast %cst_25 : f32 to vector<8x128xf32>
    %78 = arith.addf %77, %76 : vector<8x128xf32>
    %79 = arith.divf %77, %78 : vector<8x128xf32>
    %80 = arith.subf %79, %62 : vector<8x128xf32>
    %cst_26 = arith.constant 1.000000e-15 : f32
    %81 = vector.broadcast %cst_26 : f32 to vector<8x128xf32>
    %82 = arith.maximumf %80, %81 : vector<8x128xf32>
    %c4_27 = arith.constant 4 : index
    %c0_28 = arith.constant 0 : index
    %c0_29 = arith.constant 0 : index
    %83 = vector.load %arg4[%c4_27, %c0_28, %c0_29] : memref<10x8x128xf32, #tpu.memory_space<vmem>>, vector<1x8x128xf32>
    %84 = vector.shape_cast %83 : vector<1x8x128xf32> to vector<8x128xf32>
    %85 = vector.shape_cast %82 : vector<8x128xf32> to vector<1x8x128xf32>
    tpu.vector_store %arg4[%c4_27, %c0_28, %c0_29], %85 {strides = array<i32>} : memref<10x8x128xf32, #tpu.memory_space<vmem>>, vector<1x8x128xf32>,
    %c4_i32 = arith.constant 4 : i32
    %86 = vector.broadcast %c4_i32 : i32 to vector<8x128xi32>
    %87 = arith.cmpi eq, %1, %86 : vector<8x128xi32>
    %88 = arith.select %87, %82, %71 : vector<8x128xi1>, vector<8x128xf32>
    %c5 = arith.constant 5 : index
    %89 = memref.load %arg1[%c5] : memref<9xf32, #tpu.memory_space<smem>>
    %90 = vector.broadcast %89 : f32 to vector<8x128xf32>
    %91 = arith.subf %90, %0 : vector<8x128xf32>
    %92 = arith.negf %91 : vector<8x128xf32>
    %93 = math.exp %92 : vector<8x128xf32>
    %cst_30 = arith.constant 1.000000e+00 : f32
    %94 = vector.broadcast %cst_30 : f32 to vector<8x128xf32>
    %95 = arith.addf %94, %93 : vector<8x128xf32>
    %96 = arith.divf %94, %95 : vector<8x128xf32>
    %97 = arith.subf %96, %79 : vector<8x128xf32>
    %cst_31 = arith.constant 1.000000e-15 : f32
    %98 = vector.broadcast %cst_31 : f32 to vector<8x128xf32>
    %99 = arith.maximumf %97, %98 : vector<8x128xf32>
    %c5_32 = arith.constant 5 : index
    %c0_33 = arith.constant 0 : index
    %c0_34 = arith.constant 0 : index
    %100 = vector.load %arg4[%c5_32, %c0_33, %c0_34] : memref<10x8x128xf32, #tpu.memory_space<vmem>>, vector<1x8x128xf32>
    %101 = vector.shape_cast %100 : vector<1x8x128xf32> to vector<8x128xf32>
    %102 = vector.shape_cast %99 : vector<8x128xf32> to vector<1x8x128xf32>
    tpu.vector_store %arg4[%c5_32, %c0_33, %c0_34], %102 {strides = array<i32>} : memref<10x8x128xf32, #tpu.memory_space<vmem>>, vector<1x8x128xf32>,
    %c5_i32 = arith.constant 5 : i32
    %103 = vector.broadcast %c5_i32 : i32 to vector<8x128xi32>
    %104 = arith.cmpi eq, %1, %103 : vector<8x128xi32>
    %105 = arith.select %104, %99, %88 : vector<8x128xi1>, vector<8x128xf32>
    %c6 = arith.constant 6 : index
    %106 = memref.load %arg1[%c6] : memref<9xf32, #tpu.memory_space<smem>>
    %107 = vector.broadcast %106 : f32 to vector<8x128xf32>
    %108 = arith.subf %107, %0 : vector<8x128xf32>
    %109 = arith.negf %108 : vector<8x128xf32>
    %110 = math.exp %109 : vector<8x128xf32>
    %cst_35 = arith.constant 1.000000e+00 : f32
    %111 = vector.broadcast %cst_35 : f32 to vector<8x128xf32>
    %112 = arith.addf %111, %110 : vector<8x128xf32>
    %113 = arith.divf %111, %112 : vector<8x128xf32>
    %114 = arith.subf %113, %96 : vector<8x128xf32>
    %cst_36 = arith.constant 1.000000e-15 : f32
    %115 = vector.broadcast %cst_36 : f32 to vector<8x128xf32>
    %116 = arith.maximumf %114, %115 : vector<8x128xf32>
    %c6_37 = arith.constant 6 : index
    %c0_38 = arith.constant 0 : index
    %c0_39 = arith.constant 0 : index
    %117 = vector.load %arg4[%c6_37, %c0_38, %c0_39] : memref<10x8x128xf32, #tpu.memory_space<vmem>>, vector<1x8x128xf32>
    %118 = vector.shape_cast %117 : vector<1x8x128xf32> to vector<8x128xf32>
    %119 = vector.shape_cast %116 : vector<8x128xf32> to vector<1x8x128xf32>
    tpu.vector_store %arg4[%c6_37, %c0_38, %c0_39], %119 {strides = array<i32>} : memref<10x8x128xf32, #tpu.memory_space<vmem>>, vector<1x8x128xf32>,
    %c6_i32 = arith.constant 6 : i32
    %120 = vector.broadcast %c6_i32 : i32 to vector<8x128xi32>
    %121 = arith.cmpi eq, %1, %120 : vector<8x128xi32>
    %122 = arith.select %121, %116, %105 : vector<8x128xi1>, vector<8x128xf32>
    %c7 = arith.constant 7 : index
    %123 = memref.load %arg1[%c7] : memref<9xf32, #tpu.memory_space<smem>>
    %124 = vector.broadcast %123 : f32 to vector<8x128xf32>
    %125 = arith.subf %124, %0 : vector<8x128xf32>
    %126 = arith.negf %125 : vector<8x128xf32>
    %127 = math.exp %126 : vector<8x128xf32>
    %cst_40 = arith.constant 1.000000e+00 : f32
    %128 = vector.broadcast %cst_40 : f32 to vector<8x128xf32>
    %129 = arith.addf %128, %127 : vector<8x128xf32>
    %130 = arith.divf %128, %129 : vector<8x128xf32>
    %131 = arith.subf %130, %113 : vector<8x128xf32>
    %cst_41 = arith.constant 1.000000e-15 : f32
    %132 = vector.broadcast %cst_41 : f32 to vector<8x128xf32>
    %133 = arith.maximumf %131, %132 : vector<8x128xf32>
    %c7_42 = arith.constant 7 : index
    %c0_43 = arith.constant 0 : index
    %c0_44 = arith.constant 0 : index
    %134 = vector.load %arg4[%c7_42, %c0_43, %c0_44] : memref<10x8x128xf32, #tpu.memory_space<vmem>>, vector<1x8x128xf32>
    %135 = vector.shape_cast %134 : vector<1x8x128xf32> to vector<8x128xf32>
    %136 = vector.shape_cast %133 : vector<8x128xf32> to vector<1x8x128xf32>
    tpu.vector_store %arg4[%c7_42, %c0_43, %c0_44], %136 {strides = array<i32>} : memref<10x8x128xf32, #tpu.memory_space<vmem>>, vector<1x8x128xf32>,
    %c7_i32 = arith.constant 7 : i32
    %137 = vector.broadcast %c7_i32 : i32 to vector<8x128xi32>
    %138 = arith.cmpi eq, %1, %137 : vector<8x128xi32>
    %139 = arith.select %138, %133, %122 : vector<8x128xi1>, vector<8x128xf32>
    %c8 = arith.constant 8 : index
    %140 = memref.load %arg1[%c8] : memref<9xf32, #tpu.memory_space<smem>>
    %141 = vector.broadcast %140 : f32 to vector<8x128xf32>
    %142 = arith.subf %141, %0 : vector<8x128xf32>
    %143 = arith.negf %142 : vector<8x128xf32>
    %144 = math.exp %143 : vector<8x128xf32>
    %cst_45 = arith.constant 1.000000e+00 : f32
    %145 = vector.broadcast %cst_45 : f32 to vector<8x128xf32>
    %146 = arith.addf %145, %144 : vector<8x128xf32>
    %147 = arith.divf %145, %146 : vector<8x128xf32>
    %148 = arith.subf %147, %130 : vector<8x128xf32>
    %cst_46 = arith.constant 1.000000e-15 : f32
    %149 = vector.broadcast %cst_46 : f32 to vector<8x128xf32>
    %150 = arith.maximumf %148, %149 : vector<8x128xf32>
    %c8_47 = arith.constant 8 : index
    %c0_48 = arith.constant 0 : index
    %c0_49 = arith.constant 0 : index
    %151 = vector.load %arg4[%c8_47, %c0_48, %c0_49] : memref<10x8x128xf32, #tpu.memory_space<vmem>>, vector<1x8x128xf32>
    %152 = vector.shape_cast %151 : vector<1x8x128xf32> to vector<8x128xf32>
    %153 = vector.shape_cast %150 : vector<8x128xf32> to vector<1x8x128xf32>
    tpu.vector_store %arg4[%c8_47, %c0_48, %c0_49], %153 {strides = array<i32>} : memref<10x8x128xf32, #tpu.memory_space<vmem>>, vector<1x8x128xf32>,
    %c8_i32 = arith.constant 8 : i32
    %154 = vector.broadcast %c8_i32 : i32 to vector<8x128xi32>
    %155 = arith.cmpi eq, %1, %154 : vector<8x128xi32>
    %156 = arith.select %155, %150, %139 : vector<8x128xi1>, vector<8x128xf32>
    %cst_50 = arith.constant 1.000000e+00 : f32
    %157 = vector.broadcast %cst_50 : f32 to vector<8x128xf32>
    %158 = arith.subf %157, %147 : vector<8x128xf32>
    %cst_51 = arith.constant 1.000000e-15 : f32
    %159 = vector.broadcast %cst_51 : f32 to vector<8x128xf32>
    %160 = arith.maximumf %158, %159 : vector<8x128xf32>
    %c9 = arith.constant 9 : index
    %c0_52 = arith.constant 0 : index
    %c0_53 = arith.constant 0 : index
    %161 = vector.load %arg4[%c9, %c0_52, %c0_53] : memref<10x8x128xf32, #tpu.memory_space<vmem>>, vector<1x8x128xf32>
    %162 = vector.shape_cast %161 : vector<1x8x128xf32> to vector<8x128xf32>
    %163 = vector.shape_cast %160 : vector<8x128xf32> to vector<1x8x128xf32>
    tpu.vector_store %arg4[%c9, %c0_52, %c0_53], %163 {strides = array<i32>} : memref<10x8x128xf32, #tpu.memory_space<vmem>>, vector<1x8x128xf32>,
    %c9_i32 = arith.constant 9 : i32
    %164 = vector.broadcast %c9_i32 : i32 to vector<8x128xi32>
    %165 = arith.cmpi eq, %1, %164 : vector<8x128xi32>
    %166 = arith.select %165, %160, %156 : vector<8x128xi1>, vector<8x128xf32>
    %167 = tpu.iota {dimensions = array<i32: 0>} : vector<8x128xi32>
    %168 = tpu.iota {dimensions = array<i32: 1>} : vector<8x128xi32>
    %c1024_i32 = arith.constant 1024 : i32
    %169 = arith.muli %arg0, %c1024_i32 : i32
    %c128_i32 = arith.constant 128 : i32
    %170 = vector.broadcast %c128_i32 : i32 to vector<8x128xi32>
    %171 = arith.muli %167, %170 : vector<8x128xi32>
    %172 = vector.broadcast %169 : i32 to vector<8x128xi32>
    %173 = arith.addi %172, %171 : vector<8x128xi32>
    %174 = arith.addi %173, %168 : vector<8x128xi32>
    %c8_i32_54 = arith.constant 8 : i32
    %175 = vector.broadcast %c8_i32_54 : i32 to vector<8x128xi32>
    %176 = arith.cmpi slt, %174, %175 : vector<8x128xi32>
    %177 = math.log %166 : vector<8x128xf32>
    %cst_55 = arith.constant 0.000000e+00 : f32
    %178 = vector.broadcast %cst_55 : f32 to vector<8x128xf32>
    %179 = arith.select %176, %177, %178 : vector<8x128xi1>, vector<8x128xf32>
    %180 = vector.shape_cast %179 : vector<8x128xf32> to vector<1x8x128xf32>
    %cst_56 = arith.constant dense<0.000000e+00> : vector<8x128xf32>
    %181 = vector.multi_reduction <add>, %180, %cst_56 [0] : vector<1x8x128xf32> to vector<8x128xf32>
    %c0_57 = arith.constant 0 : index
    %c0_58 = arith.constant 0 : index
    %182 = vector.load %arg5[%c0_57, %c0_58] : memref<8x128xf32, #tpu.memory_space<vmem>>, vector<8x128xf32>
    tpu.vector_store %arg5[%c0_57, %c0_58], %181 {strides = array<i32>} : memref<8x128xf32, #tpu.memory_space<vmem>>, vector<8x128xf32>,
    return
  }
  func.func @transform_0(%arg0: i32) -> i32 {
    %c0_i32 = arith.constant 0 : i32
    %c0_i32_0 = arith.constant 0 : i32
    return %c0_i32 : i32
  }
  func.func @transform_1(%arg0: i32) -> (i32, i32) {
    %c0_i32 = arith.constant 0 : i32
    %c0_i32_0 = arith.constant 0 : i32
    return %arg0, %c0_i32 : i32, i32
  }
  func.func @transform_2(%arg0: i32) -> (i32, i32) {
    %c0_i32 = arith.constant 0 : i32
    %c0_i32_0 = arith.constant 0 : i32
    return %arg0, %c0_i32 : i32, i32
  }
  func.func @transform_3(%arg0: i32) -> (i32, i32, i32) {
    %c0_i32 = arith.constant 0 : i32
    %c0_i32_0 = arith.constant 0 : i32
    %c0_i32_1 = arith.constant 0 : i32
    return %c0_i32, %arg0, %c0_i32_0 : i32, i32, i32
  }
  func.func @transform_4(%arg0: i32) -> (i32, i32) {
    %c0_i32 = arith.constant 0 : i32
    %c0_i32_0 = arith.constant 0 : i32
    return %arg0, %c0_i32 : i32, i32
  }
}

</mosaic_0001>

<llo_original>
// kernel: tpu_custom_call.1
$region0: #{tpu_custom_call.1}
  #allocation0 [shape = 'u32[]', space=smem, size = 0x4, offset = 0x4, fixed_abs, tag = 'smem constant byte address 0x4 - core index']
  #allocation1 [shape = 'u32[144,128]{1,0:T(1,128)}', space=vmem, size = 0x12000, scoped, tag = 'internal scratch']
  %s0 = inlined_call_operand.hbm [shape: f32[9], index: 0, kind: input, shape index: {}]
  %s1 = inlined_call_operand.hbm [shape: f32[8,128], index: 1, kind: input, shape index: {}]
  %s2 = inlined_call_operand.hbm [shape: s32[8,128], index: 2, kind: input, shape index: {}]
  %s3 = inlined_call_operand.hbm [shape: f32[10,8,128], index: 3, kind: output, shape index: {0}]
  %s4 = inlined_call_operand.hbm [shape: f32[8,128], index: 4, kind: output, shape index: {1}]
  %5 = xla_tuple %s3, %s4
  %s6 = sld [smem:[#allocation0]]
  $region42: #{tpu_custom_call.1} parent=0
    _
  %s8 = ssub.s32 1, %s6
  %s9 = scalar_select 0, %s8, %s6
  $region1: #{tpu_custom_call.1} parent=0
    #allocation2 [shape = 'u8[512]{0}', space=smem, size = 0x200, scoped, tag = 'input window, operand 0, single buffered']
    #allocation3 [shape = 's32[1]{0}', space=sflag, size = 0x4, scoped, tag = 'scoped memory for tpu_custom_call.1']
    #allocation4 [shape = 's32[1]{0}', space=sflag, size = 0x4, scoped, tag = 'scoped memory for tpu_custom_call.1']
    #allocation5 [shape = 's32[1]{0}', space=sflag, size = 0x4, scoped, tag = 'scoped memory for tpu_custom_call.1']
    #allocation6 [shape = 'u8[4096]{0}', space=vmem, size = 0x1000, scoped, tag = 'input window, operand 1, single buffered']
    #allocation7 [shape = 'u8[4096]{0}', space=vmem, size = 0x1000, scoped, tag = 'input window, operand 2, single buffered']
    #allocation8 [shape = 's32[1]{0}', space=sflag, size = 0x4, scoped, tag = 'scoped memory for tpu_custom_call.1']
    #allocation9 [shape = 'u8[40960]{0}', space=vmem, size = 0xa000, scoped, tag = 'output window, operand 0, single buffered']
    #allocation10 [shape = 'u8[4096]{0}', space=vmem, size = 0x1000, scoped, tag = 'output window, operand 1, single buffered']
    #allocation11 [shape = 's32[1]{0}', space=sflag, size = 0x4, scoped, tag = 'scoped memory for tpu_custom_call.1']
    %10 = vsyncpa [#allocation5], 0
    %11 = vsyncpa [#allocation3], 0
    %12 = vsyncpa [#allocation8], 0
    %13 = vsyncpa [#allocation4], 0
    %14 = vsyncpa [#allocation11], 0
    // Predicated region
    $region2: #{tpu_custom_call.1} parent=1 // pred_check
      _
    $region3: #{tpu_custom_call.1} parent=1 // pred_check_branch
      %16 = sbr.rel (0) target = $region5
    $region4: #{tpu_custom_call.1} parent=1 // pred_region
      %s18 = ssub.s32 16, 16
      %19 = vsyncadd [#allocation5], %s18
      %22 = dma.hbm_to_smem %s0, 16, [#allocation2], [#allocation5]
    $region5: #{tpu_custom_call.1} parent=1 // pred_fallthru
      _
    // Predicated region
    $region6: #{tpu_custom_call.1} parent=1 // pred_check
      _
    $region7: #{tpu_custom_call.1} parent=1 // pred_check_branch
      %24 = sbr.rel (0) target = $region9
    $region8: #{tpu_custom_call.1} parent=1 // pred_region
      %s26 = ssub.s32 128, 128
      %27 = vsyncadd [#allocation3], %s26
      %s29 = sshll.u32 [#allocation6], 4
      %s30 = int_to_ptr.vmem [resolvable:$true] %s29
      %32 = dma.hbm_to_vmem [thread:$0]  %s1, 128, %s30, [#allocation3]
    $region9: #{tpu_custom_call.1} parent=1 // pred_fallthru
      _
    // Predicated region
    $region10: #{tpu_custom_call.1} parent=1 // pred_check
      _
    $region11: #{tpu_custom_call.1} parent=1 // pred_check_branch
      %34 = sbr.rel (0) target = $region13
    $region12: #{tpu_custom_call.1} parent=1 // pred_region
      %s36 = ssub.s32 128, 128
      %37 = vsyncadd [#allocation8], %s36
      %s39 = sshll.u32 [#allocation7], 4
      %s40 = int_to_ptr.vmem [resolvable:$true] %s39
      %42 = dma.hbm_to_vmem [thread:$0]  %s2, 128, %s40, [#allocation8]
    $region13: #{tpu_custom_call.1} parent=1 // pred_fallthru
      _
    // Predicated region
    $region14: #{tpu_custom_call.1} parent=1 // pred_check
      _
    $region15: #{tpu_custom_call.1} parent=1 // pred_check_branch
      %44 = sbr.rel (0) target = $region17
    $region16: #{tpu_custom_call.1} parent=1 // pred_region
      %45 = dma.done [#allocation5], 16
    $region17: #{tpu_custom_call.1} parent=1 // pred_fallthru
      _
    // Predicated region
    $region18: #{tpu_custom_call.1} parent=1 // pred_check
      _
    $region19: #{tpu_custom_call.1} parent=1 // pred_check_branch
      %47 = sbr.rel (0) target = $region21
    $region20: #{tpu_custom_call.1} parent=1 // pred_region
      %48 = dma.done [#allocation3], 128
    $region21: #{tpu_custom_call.1} parent=1 // pred_fallthru
      _
    // Predicated region
    $region22: #{tpu_custom_call.1} parent=1 // pred_check
      _
    $region23: #{tpu_custom_call.1} parent=1 // pred_check_branch
      %50 = sbr.rel (0) target = $region25
    $region24: #{tpu_custom_call.1} parent=1 // pred_region
      %51 = dma.done [#allocation8], 128
    $region25: #{tpu_custom_call.1} parent=1 // pred_fallthru
      _
    %52 = sfence
    %v53 = vld [vmem:[#allocation6] sm:$0xff]
    %v54 = vld [vmem:[#allocation7] sm:$0xff]
    %s55 = sld [smem:[#allocation2]]
    %v56 = vstv %s55
    %v57 = vsub.f32 %v56, %v53
    %v58 = vxor.u32 %v57, 2147483648
    %v59 = vmul.f32 %v58, 1.442695
    %v60 = vpow.pop %v59
    %v61 = vadd.f32 %v60, 1.0
    %v62 = vrcp.pop %v61
    %v63 = vmul.f32 1.0, %v62
    %v64 = vmax.f32 %v63, 1e-15
    %65 = vst [vmem:[#allocation9] sm:$0xff] %v64
    %vm66 = vcmp.eq.s32.totalorder %v54, 0
    %v67 = vsel %vm66, %v64, 0.0
    %s68 = sld [smem:[#allocation2 + $0x1]]
    %v69 = vstv %s68
    %v70 = vsub.f32 %v69, %v53
    %v71 = vxor.u32 %v70, 2147483648
    %v72 = vmul.f32 %v71, 1.442695
    %v73 = vpow.pop %v72
    %v74 = vadd.f32 %v73, 1.0
    %v75 = vrcp.pop %v74
    %v76 = vmul.f32 1.0, %v75
    %v77 = vsub.f32 %v76, %v63
    %v78 = vmax.f32 %v77, 1e-15
    %s79 = scalar_lea.vmem [#allocation9], 8
    %80 = vst [vmem:[%s79] sm:$0xff] %v78
    %vm81 = vcmp.eq.s32.totalorder %v54, 1
    %v82 = vsel %vm81, %v78, %v67
    %s83 = sld [smem:[#allocation2 + $0x2]]
    %v84 = vstv %s83
    %v85 = vsub.f32 %v84, %v53
    %v86 = vxor.u32 %v85, 2147483648
    %v87 = vmul.f32 %v86, 1.442695
    %v88 = vpow.pop %v87
    %v89 = vadd.f32 %v88, 1.0
    %v90 = vrcp.pop %v89
    %v91 = vmul.f32 1.0, %v90
    %v92 = vsub.f32 %v91, %v76
    %v93 = vmax.f32 %v92, 1e-15
    %s94 = scalar_lea.vmem [#allocation9], 16
    %95 = vst [vmem:[%s94] sm:$0xff] %v93
    %vm96 = vcmp.eq.s32.totalorder %v54, 2
    %v97 = vsel %vm96, %v93, %v82
    %s98 = sld [smem:[#allocation2 + $0x3]]
    %v99 = vstv %s98
    %v100 = vsub.f32 %v99, %v53
    %v101 = vxor.u32 %v100, 2147483648
    %v102 = vmul.f32 %v101, 1.442695
    %v103 = vpow.pop %v102
    %v104 = vadd.f32 %v103, 1.0
    %v105 = vrcp.pop %v104
    %v106 = vmul.f32 1.0, %v105
    %v107 = vsub.f32 %v106, %v91
    %v108 = vmax.f32 %v107, 1e-15
    %s109 = scalar_lea.vmem [#allocation9], 24
    %110 = vst [vmem:[%s109] sm:$0xff] %v108
    %vm111 = vcmp.eq.s32.totalorder %v54, 3
    %v112 = vsel %vm111, %v108, %v97
    %s113 = sld [smem:[#allocation2 + $0x4]]
    %v114 = vstv %s113
    %v115 = vsub.f32 %v114, %v53
    %v116 = vxor.u32 %v115, 2147483648
    %v117 = vmul.f32 %v116, 1.442695
    %v118 = vpow.pop %v117
    %v119 = vadd.f32 %v118, 1.0
    %v120 = vrcp.pop %v119
    %v121 = vmul.f32 1.0, %v120
    %v122 = vsub.f32 %v121, %v106
    %v123 = vmax.f32 %v122, 1e-15
    %s124 = scalar_lea.vmem [#allocation9], 32
    %125 = vst [vmem:[%s124] sm:$0xff] %v123
    %vm126 = vcmp.eq.s32.totalorder %v54, 4
    %v127 = vsel %vm126, %v123, %v112
    %s128 = sld [smem:[#allocation2 + $0x5]]
    %v129 = vstv %s128
    %v130 = vsub.f32 %v129, %v53
    %v131 = vxor.u32 %v130, 2147483648
    %v132 = vmul.f32 %v131, 1.442695
    %v133 = vpow.pop %v132
    %v134 = vadd.f32 %v133, 1.0
    %v135 = vrcp.pop %v134
    %v136 = vmul.f32 1.0, %v135
    %v137 = vsub.f32 %v136, %v121
    %v138 = vmax.f32 %v137, 1e-15
    %s139 = scalar_lea.vmem [#allocation9], 40
    %140 = vst [vmem:[%s139] sm:$0xff] %v138
    %vm141 = vcmp.eq.s32.totalorder %v54, 5
    %v142 = vsel %vm141, %v138, %v127
    %s143 = sld [smem:[#allocation2 + $0x6]]
    %v144 = vstv %s143
    %v145 = vsub.f32 %v144, %v53
    %v146 = vxor.u32 %v145, 2147483648
    %v147 = vmul.f32 %v146, 1.442695
    %v148 = vpow.pop %v147
    %v149 = vadd.f32 %v148, 1.0
    %v150 = vrcp.pop %v149
    %v151 = vmul.f32 1.0, %v150
    %v152 = vsub.f32 %v151, %v136
    %v153 = vmax.f32 %v152, 1e-15
    %s154 = scalar_lea.vmem [#allocation9], 48
    %155 = vst [vmem:[%s154] sm:$0xff] %v153
    %vm156 = vcmp.eq.s32.totalorder %v54, 6
    %v157 = vsel %vm156, %v153, %v142
    %s158 = sld [smem:[#allocation2 + $0x7]]
    %v159 = vstv %s158
    %v160 = vsub.f32 %v159, %v53
    %v161 = vxor.u32 %v160, 2147483648
    %v162 = vmul.f32 %v161, 1.442695
    %v163 = vpow.pop %v162
    %v164 = vadd.f32 %v163, 1.0
    %v165 = vrcp.pop %v164
    %v166 = vmul.f32 1.0, %v165
    %v167 = vsub.f32 %v166, %v151
    %v168 = vmax.f32 %v167, 1e-15
    %s169 = scalar_lea.vmem [#allocation9], 56
    %170 = vst [vmem:[%s169] sm:$0xff] %v168
    %vm171 = vcmp.eq.s32.totalorder %v54, 7
    %v172 = vsel %vm171, %v168, %v157
    %s173 = sld [smem:[#allocation2 + $0x8]]
    %v174 = vstv %s173
    %v175 = vsub.f32 %v174, %v53
    %v176 = vxor.u32 %v175, 2147483648
    %v177 = vmul.f32 %v176, 1.442695
    %v178 = vpow.pop %v177
    %v179 = vadd.f32 %v178, 1.0
    %v180 = vrcp.pop %v179
    %v181 = vmul.f32 1.0, %v180
    %v182 = vsub.f32 %v181, %v166
    %v183 = vmax.f32 %v182, 1e-15
    %s184 = scalar_lea.vmem [#allocation9], 64
    %185 = vst [vmem:[%s184] sm:$0xff] %v183
    %vm186 = vcmp.eq.s32.totalorder %v54, 8
    %v187 = vsel %vm186, %v183, %v172
    %v188 = vsub.f32 1.0, %v181
    %v189 = vmax.f32 %v188, 1e-15
    %s190 = scalar_lea.vmem [#allocation9], 72
    %191 = vst [vmem:[%s190] sm:$0xff] %v189
    %vm192 = vcmp.eq.s32.totalorder %v54, 9
    %v193 = vsel %vm192, %v189, %v187
    %v194 = vlaneseq
    %v195 = vshrl.u32 %v194, 7
    %v196 = vlaneseq
    %v197 = vand.u32 %v196, 127
    %s198 = smul.u32 0, 1024
    %v199 = vmul.u32 %v195, 128
    %v200 = vstv %s198
    %v201 = vadd.s32 %v200, %v199
    %v202 = vadd.s32 %v201, %v197
    %vm203 = vcmp.lt.s32.totalorder %v202, 8
    %v204 = vlog2.pop %v193
    %v205 = vmul.f32 %v204, 0.6931472
    %v206 = vsel %vm203, %v205, 0.0
    %v207 = vadd.f32 %v206, 0.0
    %208 = vst [vmem:[#allocation10] sm:$0xff] %v207
    // Predicated region
    $region26: #{tpu_custom_call.1} parent=1 // pred_check
      _
    $region27: #{tpu_custom_call.1} parent=1 // pred_check_branch
      %210 = sbr.rel (0) target = $region29
    $region28: #{tpu_custom_call.1} parent=1 // pred_region
      %s212 = ssub.s32 1280, 1280
      %213 = vsyncadd [#allocation4], %s212
      %s214 = sshll.u32 [#allocation9], 4
      %s215 = int_to_ptr.vmem [resolvable:$true] %s214
      %220 = dma.vmem_to_hbm [thread:$0]  %s215, 1280, %s3, [#allocation4], 128, 128, 8
    $region29: #{tpu_custom_call.1} parent=1 // pred_fallthru
      _
    // Predicated region
    $region30: #{tpu_custom_call.1} parent=1 // pred_check
      _
    $region31: #{tpu_custom_call.1} parent=1 // pred_check_branch
      %222 = sbr.rel (0) target = $region33
    $region32: #{tpu_custom_call.1} parent=1 // pred_region
      %s224 = ssub.s32 128, 128
      %225 = vsyncadd [#allocation11], %s224
      %s227 = sshll.u32 [#allocation10], 4
      %s228 = int_to_ptr.vmem [resolvable:$true] %s227
      %230 = dma.vmem_to_hbm [thread:$0]  %s228, 128, %s4, [#allocation11]
    $region33: #{tpu_custom_call.1} parent=1 // pred_fallthru
      _
    // Predicated region
    $region34: #{tpu_custom_call.1} parent=1 // pred_check
      _
    $region35: #{tpu_custom_call.1} parent=1 // pred_check_branch
      %232 = sbr.rel (0) target = $region37
    $region36: #{tpu_custom_call.1} parent=1 // pred_region
      %233 = dma.done [#allocation4], 1280
    $region37: #{tpu_custom_call.1} parent=1 // pred_fallthru
      _
    // Predicated region
    $region38: #{tpu_custom_call.1} parent=1 // pred_check
      _
    $region39: #{tpu_custom_call.1} parent=1 // pred_check_branch
      %235 = sbr.rel (0) target = $region41
    $region40: #{tpu_custom_call.1} parent=1 // pred_region
      %236 = dma.done [#allocation11], 128
    $region41: #{tpu_custom_call.1} parent=1 // pred_fallthru
      _
    %237 = vsyncpa [#allocation3], 1
    %238 = vsyncpa [#allocation8], 1
    %239 = vsyncpa [#allocation4], 1
    %240 = vsyncpa [#allocation11], 1
    %241 = vsyncpa [#allocation5], 1

</llo_original>
